<compile_context>
chip_gen: v7x
topology: tpu7x:2x2x1
jax: 0.10.0
libtpu: 0.0.40
codegen_flags: <defaults>
</compile_context>

<pallas_src>
import functools

import jax
import jax.numpy as jnp
from jax import lax
from jax.experimental import pallas as pl
from jax.experimental.pallas import tpu as pltpu


NT_DIMS = (((1,), (1,)), ((), ()))   # contract dim 1 of lhs with dim 1 of rhs (A @ B^T)
NEG_INF = -1e30


def _self_attn_kernel(x_ref, a_ref, w_ref, wv_ref, bv_ref, g_ref,
                      out_ref, attn_ref, v_scratch, *, n_valid, tq):
    """One (batch, query-tile) grid step.

    x_ref    : (1, Np, C) f32   padded per-batch feature map (resident across q-tiles)
    a_ref    : (C, C)     bf16  folded Wq^T @ Wk
    w_ref    : (1, C)     bf16  folded Wk^T @ bq (per-key bias direction)
    wv_ref   : (C, C)     bf16  Wv^T
    bv_ref   : (1, C)     f32
    g_ref    : (1,)       f32   gamma (SMEM scalar)
    out_ref  : (1, TQ, C) f32
    attn_ref : (1, TQ, Np)
    v_scratch: (Np, C)    bf16  value projection, cached once per batch
    """
    qi = pl.program_id(1)
    np_ = x_ref.shape[1]

    x_all = x_ref[0]                               # (Np, C) f32
    xb_all = x_all.astype(jnp.bfloat16)

    # Cache the value projection for the whole batch (reused by every q-tile).
    @pl.when(qi == 0)
    def _():
        v = jnp.dot(xb_all, wv_ref[...],
                    preferred_element_type=jnp.float32) + bv_ref[...]
        v_scratch[...] = v.astype(jnp.bfloat16)

    q_start = pl.multiple_of(qi * tq, 128)
    xq = x_ref[0, pl.ds(q_start, tq), :]           # (TQ, C) f32 (kept for residual)
    xqb = xq.astype(jnp.bfloat16)

    # energy[i, j] = (Wq x_i + bq) . (Wk x_j + bk)
    #             = x_i (Wq^T Wk) x_j^T + (Wk^T bq) . x_j + row_const_i
    # row_const_i cancels in the row softmax, so it is dropped.
    xa = jnp.dot(xqb, a_ref[...],
                 preferred_element_type=jnp.float32).astype(jnp.bfloat16)   # (TQ, C)
    energy = lax.dot_general(xa, xb_all, NT_DIMS,
                             preferred_element_type=jnp.float32)            # (TQ, Np)
    kb = lax.dot_general(w_ref[...], xb_all, NT_DIMS,
                         preferred_element_type=jnp.float32)                # (1, Np)
    energy = energy + kb

    if n_valid < np_:   # mask zero-padded key columns (static condition)
        col = lax.broadcasted_iota(jnp.int32, energy.shape, 1)
        energy = jnp.where(col < n_valid, energy, NEG_INF)

    # Exact row softmax (the full key axis lives in this tile) in f32.
    m = jnp.max(energy, axis=-1, keepdims=True)
    p = jnp.exp(energy - m)
    attn = p * pl.reciprocal(jnp.sum(p, axis=-1, keepdims=True), approx=True)
    attn_ref[0] = attn.astype(attn_ref.dtype)

    # out = gamma * (attn @ V) + x
    o = jnp.dot(attn.astype(jnp.bfloat16), v_scratch[...],
                preferred_element_type=jnp.float32)                         # (TQ, C)
    out_ref[0] = g_ref[0] * o + xq


def self_attn_forward(x, wq, bq, wk, bk, wv, bv, gamma, *, attn_dtype=jnp.float32):
    """x: (B, C, W, H) f32.  wq/wk: (C//8, C), wv: (C, C), biases 1-D, gamma (1,).

    Note: bk only contributes row-constant terms to the attention logits and the
    module never returns `energy`, so it does not affect the outputs.
    """
    B, C, W, H = x.shape
    N = W * H
    n_pad = ((N + 127) // 128) * 128

    tq = 128
    for cand in (512, 384, 256, 128):
        if n_pad % cand == 0:
            tq = cand
            break
    n_qt = n_pad // tq

    # Layout glue: NCHW -> (B, N, C), zero-pad N up to a lane-dense multiple of 128.
    x_nc = x.reshape(B, C, N).transpose(0, 2, 1).astype(jnp.float32)
    if n_pad != N:
        x_nc = jnp.pad(x_nc, ((0, 0), (0, n_pad - N), (0, 0)))

    # Fold q/k projections (weight-only work, done once).
    a_mat = (wq.T @ wk).astype(jnp.bfloat16)                 # (C, C)  = Wq^T Wk
    w_vec = (bq @ wk).reshape(1, C).astype(jnp.bfloat16)     # (1, C)  = (Wk^T bq)^T
    wv_t = wv.T.astype(jnp.bfloat16)                         # (C, C)
    bv2 = bv.reshape(1, C).astype(jnp.float32)
    g1 = gamma.reshape(1).astype(jnp.float32)

    attn_bytes = jnp.dtype(attn_dtype).itemsize
    flops = 2 * B * (2 * n_pad * C * C + 2 * n_pad * n_pad * C + n_pad * C)
    bytes_accessed = (B * (n_pad * C * 4 * 2 + n_pad * n_pad * attn_bytes)
                      + 2 * C * C * 2)
    cost = pl.CostEstimate(flops=flops, transcendentals=B * n_pad * n_pad,
                           bytes_accessed=bytes_accessed)

    vmem_est = (2 * n_pad * C * 4            # x (double buffered)
                + 2 * tq * n_pad * attn_bytes  # attn out blocks
                + 2 * tq * C * 4               # out blocks
                + n_pad * C * 2                # V scratch (bf16)
                + 4 * tq * n_pad * 4           # live energy/p/attn intermediates
                + 4 * C * C * 2 + (1 << 16))   # weights + slack
    vmem_limit = int(min(110 * (1 << 20), max(32 * (1 << 20), int(vmem_est * 1.3))))

    kernel = functools.partial(_self_attn_kernel, n_valid=N, tq=tq)

    out_pad, attn_pad = pl.pallas_call(
        kernel,
        out_shape=(
            jax.ShapeDtypeStruct((B, n_pad, C), jnp.float32),
            jax.ShapeDtypeStruct((B, n_pad, n_pad), attn_dtype),
        ),
        grid=(B, n_qt),
        in_specs=[
            pl.BlockSpec((1, n_pad, C), lambda b, q: (b, 0, 0)),   # x (per-batch, resident)
            pl.BlockSpec((C, C), lambda b, q: (0, 0)),             # A = Wq^T Wk
            pl.BlockSpec((1, C), lambda b, q: (0, 0)),             # w = Wk^T bq
            pl.BlockSpec((C, C), lambda b, q: (0, 0)),             # Wv^T
            pl.BlockSpec((1, C), lambda b, q: (0, 0)),             # bv
            pl.BlockSpec(memory_space=pltpu.MemorySpace.SMEM),     # gamma scalar
        ],
        out_specs=[
            pl.BlockSpec((1, tq, C), lambda b, q: (b, q, 0)),      # out tile
            pl.BlockSpec((1, tq, n_pad), lambda b, q: (b, q, 0)),  # attn tile (lane-dense)
        ],
        scratch_shapes=[pltpu.VMEM((n_pad, C), jnp.bfloat16)],     # cached V
        compiler_params=pltpu.CompilerParams(
            dimension_semantics=("parallel", "arbitrary"),
            vmem_limit_bytes=vmem_limit),
        cost_estimate=cost,
    )(x_nc, a_mat, w_vec, wv_t, bv2, g1)

    # Strip padding and restore NCHW.
    out = out_pad[:, :N, :].transpose(0, 2, 1).reshape(B, C, W, H)
    attn = attn_pad[:, :N, :N]
    return out, attn


def reference_forward(x, wq, bq, wk, bk, wv, bv, gamma):
    """Pure-JAX f32 reference mirroring the PyTorch forward (for verification)."""
    B, C, W, H = x.shape
    N = W * H
    xf = x.reshape(B, C, N)                                          # (B, C, N)
    q = jnp.einsum("oc,bcn->bon", wq, xf) + bq[None, :, None]        # (B, C8, N)
    k = jnp.einsum("oc,bcn->bon", wk, xf) + bk[None, :, None]        # (B, C8, N)
    v = jnp.einsum("oc,bcn->bon", wv, xf) + bv[None, :, None]        # (B, C, N)
    energy = jnp.einsum("bci,bcj->bij", q, k)                        # (B, N, N)
    attn = jax.nn.softmax(energy, axis=-1)
    out = jnp.einsum("bcj,bij->bci", v, attn)                        # (B, C, N)
    out = out.reshape(B, C, W, H)
    out = gamma[0] * out + x
    return out, attn


if __name__ == "__main__":
    # Small shapes consistent with the module (in_dim must be >= 8).
    B, C, W, H = 2, 16, 8, 8
    C8 = C // 8

    key = jax.random.PRNGKey(0)
    kx, kq, kbq, kk, kbk, kv, kbv = jax.random.split(key, 7)

    x = jax.random.normal(kx, (B, C, W, H), dtype=jnp.float32)
    wq = 0.1 * jax.random.normal(kq, (C8, C), dtype=jnp.float32)
    bq = 0.1 * jax.random.normal(kbq, (C8,), dtype=jnp.float32)
    wk = 0.1 * jax.random.normal(kk, (C8, C), dtype=jnp.float32)
    bk = 0.1 * jax.random.normal(kbk, (C8,), dtype=jnp.float32)
    wv = 0.1 * jax.random.normal(kv, (C, C), dtype=jnp.float32)
    bv = 0.1 * jax.random.normal(kbv, (C,), dtype=jnp.float32)
    gamma = jnp.array([0.5], dtype=jnp.float32)   # nonzero to exercise the epilogue

    out, attn = self_attn_forward(x, wq, bq, wk, bk, wv, bv, gamma)
    out = jax.block_until_ready(out)
    attn = jax.block_until_ready(attn)

    out_ref, attn_ref = reference_forward(x, wq, bq, wk, bk, wv, bv, gamma)
    assert out.shape == (B, C, W, H) and attn.shape == (B, W * H, W * H)
    # bf16 MXU operands + EUP-approx reciprocal -> relaxed tolerance vs f32 reference.
    assert jnp.allclose(attn, attn_ref, atol=2e-2, rtol=2e-2)
    assert jnp.allclose(out, out_ref, atol=2e-2, rtol=2e-2)

    print("KERNEL_OK")
</pallas_src>

<mosaic_0001>
module attributes {stable_mosaic.version = 11 : i64} {
  func.func @_self_attn_kernel(%arg0: i32, %arg1: i32, %arg2: memref<1x128x16xf32, #tpu.memory_space<vmem>>, %arg3: memref<16x16xbf16, #tpu.memory_space<vmem>>, %arg4: memref<1x16xbf16, #tpu.memory_space<vmem>>, %arg5: memref<16x16xbf16, #tpu.memory_space<vmem>>, %arg6: memref<1x16xf32, #tpu.memory_space<vmem>>, %arg7: memref<1xf32, #tpu.memory_space<smem>>, %arg8: memref<1x128x16xf32, #tpu.memory_space<vmem>>, %arg9: memref<1x128x128xf32, #tpu.memory_space<vmem>>, %arg10: memref<128x16xbf16, #tpu.memory_space<vmem>>) attributes {dimension_semantics = [#tpu.dimension_semantics<parallel>, #tpu.dimension_semantics<arbitrary>], iteration_bounds = array<i64: 2, 1>, scalar_prefetch = 0 : i64, scratch_operands = 1 : i64, tpu.core_type = #tpu.core_type<tc>, window_params = [{transform_indices = @transform_0, window_bounds = array<i64: 1, 128, 16>}, {pipeline_mode = #tpu.pipeline_mode<synchronous>, transform_indices = @transform_1, window_bounds = array<i64: 16, 16>}, {pipeline_mode = #tpu.pipeline_mode<synchronous>, transform_indices = @transform_2, window_bounds = array<i64: 1, 16>}, {pipeline_mode = #tpu.pipeline_mode<synchronous>, transform_indices = @transform_3, window_bounds = array<i64: 16, 16>}, {pipeline_mode = #tpu.pipeline_mode<synchronous>, transform_indices = @transform_4, window_bounds = array<i64: 1, 16>}, {transform_indices = @transform_5, window_bounds = array<i64: 1>}, {transform_indices = @transform_6, window_bounds = array<i64: 1, 128, 16>}, {transform_indices = @transform_7, window_bounds = array<i64: 1, 128, 128>}]} {
    %c0 = arith.constant 0 : index
    %c0_0 = arith.constant 0 : index
    %c0_1 = arith.constant 0 : index
    %0 = vector.load %arg2[%c0, %c0_0, %c0_1] : memref<1x128x16xf32, #tpu.memory_space<vmem>>, vector<1x128x16xf32>
    %1 = vector.shape_cast %0 : vector<1x128x16xf32> to vector<128x16xf32>
    %2 = arith.truncf %1 : vector<128x16xf32> to vector<128x16xbf16>
    %c0_i32 = arith.constant 0 : i32
    %3 = arith.cmpi eq, %arg1, %c0_i32 : i32
    %4 = arith.extui %3 : i1 to i32
    %c0_i32_2 = arith.constant 0 : i32
    %5 = arith.cmpi ne, %4, %c0_i32_2 : i32
    scf.if %5 {
      %c0_24 = arith.constant 0 : index
      %c0_25 = arith.constant 0 : index
      %48 = vector.load %arg5[%c0_24, %c0_25] : memref<16x16xbf16, #tpu.memory_space<vmem>>, vector<16x16xbf16>
      %cst_26 = arith.constant dense<0.000000e+00> : vector<128x16xf32>
      %49 = tpu.matmul %2, %48, %cst_26 {dimension_numbers = #tpu.dot_dimension_numbers<[1], [0], [0], [1], [0, 0, 1, 1], [], []>} : vector<128x16xbf16>, vector<16x16xbf16>, vector<128x16xf32> -> vector<128x16xf32>
      %c0_27 = arith.constant 0 : index
      %c0_28 = arith.constant 0 : index
      %50 = vector.load %arg6[%c0_27, %c0_28] : memref<1x16xf32, #tpu.memory_space<vmem>>, vector<1x16xf32>
      %51 = vector.broadcast %50 : vector<1x16xf32> to vector<128x16xf32>
      %52 = arith.addf %49, %51 : vector<128x16xf32>
      %53 = arith.truncf %52 : vector<128x16xf32> to vector<128x16xbf16>
      %c0_29 = arith.constant 0 : index
      %c0_30 = arith.constant 0 : index
      %54 = vector.load %arg10[%c0_29, %c0_30] : memref<128x16xbf16, #tpu.memory_space<vmem>>, vector<128x16xbf16>
      tpu.vector_store %arg10[%c0_29, %c0_30], %53 {strides = array<i32>} : memref<128x16xbf16, #tpu.memory_space<vmem>>, vector<128x16xbf16>,
    } else {
    }
    %c128_i32 = arith.constant 128 : i32
    %6 = arith.muli %arg1, %c128_i32 : i32
    %7 = tpu.assume_multiple %6, 128 : i32
    %c0_3 = arith.constant 0 : index
    %8 = arith.index_cast %7 : i32 to index
    %c0_4 = arith.constant 0 : index
    %9 = vector.load %arg2[%c0_3, %8, %c0_4] : memref<1x128x16xf32, #tpu.memory_space<vmem>>, vector<1x128x16xf32>
    %10 = vector.shape_cast %9 : vector<1x128x16xf32> to vector<128x16xf32>
    %11 = arith.truncf %10 : vector<128x16xf32> to vector<128x16xbf16>
    %c0_5 = arith.constant 0 : index
    %c0_6 = arith.constant 0 : index
    %12 = vector.load %arg3[%c0_5, %c0_6] : memref<16x16xbf16, #tpu.memory_space<vmem>>, vector<16x16xbf16>
    %cst = arith.constant dense<0.000000e+00> : vector<128x16xf32>
    %13 = tpu.matmul %11, %12, %cst {dimension_numbers = #tpu.dot_dimension_numbers<[1], [0], [0], [1], [0, 0, 1, 1], [], []>} : vector<128x16xbf16>, vector<16x16xbf16>, vector<128x16xf32> -> vector<128x16xf32>
    %14 = arith.truncf %13 : vector<128x16xf32> to vector<128x16xbf16>
    %cst_7 = arith.constant dense<0.000000e+00> : vector<128x128xf32>
    %15 = tpu.matmul %14, %2, %cst_7 {dimension_numbers = #tpu.dot_dimension_numbers<[1], [1], [0], [0], [0, 0, 1, 0], [], []>} : vector<128x16xbf16>, vector<128x16xbf16>, vector<128x128xf32> -> vector<128x128xf32>
    %c0_8 = arith.constant 0 : index
    %c0_9 = arith.constant 0 : index
    %16 = vector.load %arg4[%c0_8, %c0_9] : memref<1x16xbf16, #tpu.memory_space<vmem>>, vector<1x16xbf16>
    %cst_10 = arith.constant dense<0.000000e+00> : vector<1x128xf32>
    %17 = tpu.matmul %16, %2, %cst_10 {dimension_numbers = #tpu.dot_dimension_numbers<[1], [1], [0], [0], [0, 0, 1, 0], [], []>} : vector<1x16xbf16>, vector<128x16xbf16>, vector<1x128xf32> -> vector<1x128xf32>
    %18 = vector.broadcast %17 : vector<1x128xf32> to vector<128x128xf32>
    %19 = arith.addf %15, %18 : vector<128x128xf32>
    %20 = tpu.iota {dimensions = array<i32: 1>} : vector<128x128xi32>
    %c64_i32 = arith.constant 64 : i32
    %21 = vector.broadcast %c64_i32 : i32 to vector<128x128xi32>
    %22 = arith.cmpi slt, %20, %21 : vector<128x128xi32>
    %cst_11 = arith.constant -1.000000e+30 : f32
    %23 = vector.broadcast %cst_11 : f32 to vector<128x128xf32>
    %24 = arith.select %22, %19, %23 : vector<128x128xi1>, vector<128x128xf32>
    %cst_12 = arith.constant dense<0xFF800000> : vector<128xf32>
    %25 = vector.multi_reduction <maximumf>, %24, %cst_12 [1] : vector<128x128xf32> to vector<128xf32>
    %26 = vector.shape_cast %25 : vector<128xf32> to vector<128x1xf32>
    %27 = vector.broadcast %26 : vector<128x1xf32> to vector<128x128xf32>
    %28 = arith.subf %24, %27 : vector<128x128xf32>
    %29 = math.exp %28 : vector<128x128xf32>
    %cst_13 = arith.constant dense<0.000000e+00> : vector<128xf32>
    %30 = vector.multi_reduction <add>, %29, %cst_13 [1] : vector<128x128xf32> to vector<128xf32>
    %31 = vector.shape_cast %30 : vector<128xf32> to vector<128x1xf32>
    %32 = tpu.reciprocal %31 {approx = true} : vector<128x1xf32> -> vector<128x1xf32>
    %33 = vector.broadcast %32 : vector<128x1xf32> to vector<128x128xf32>
    %34 = arith.mulf %29, %33 : vector<128x128xf32>
    %c0_14 = arith.constant 0 : index
    %c0_15 = arith.constant 0 : index
    %c0_16 = arith.constant 0 : index
    %35 = vector.load %arg9[%c0_14, %c0_15, %c0_16] : memref<1x128x128xf32, #tpu.memory_space<vmem>>, vector<1x128x128xf32>
    %36 = vector.shape_cast %35 : vector<1x128x128xf32> to vector<128x128xf32>
    %37 = vector.shape_cast %34 : vector<128x128xf32> to vector<1x128x128xf32>
    tpu.vector_store %arg9[%c0_14, %c0_15, %c0_16], %37 {strides = array<i32>} : memref<1x128x128xf32, #tpu.memory_space<vmem>>, vector<1x128x128xf32>,
    %38 = arith.truncf %34 : vector<128x128xf32> to vector<128x128xbf16>
    %c0_17 = arith.constant 0 : index
    %c0_18 = arith.constant 0 : index
    %39 = vector.load %arg10[%c0_17, %c0_18] : memref<128x16xbf16, #tpu.memory_space<vmem>>, vector<128x16xbf16>
    %cst_19 = arith.constant dense<0.000000e+00> : vector<128x16xf32>
    %40 = tpu.matmul %38, %39, %cst_19 {dimension_numbers = #tpu.dot_dimension_numbers<[1], [0], [0], [1], [0, 0, 1, 1], [], []>} : vector<128x128xbf16>, vector<128x16xbf16>, vector<128x16xf32> -> vector<128x16xf32>
    %c0_20 = arith.constant 0 : index
    %41 = memref.load %arg7[%c0_20] : memref<1xf32, #tpu.memory_space<smem>>
    %42 = vector.broadcast %41 : f32 to vector<128x16xf32>
    %43 = arith.mulf %42, %40 : vector<128x16xf32>
    %44 = arith.addf %43, %10 : vector<128x16xf32>
    %c0_21 = arith.constant 0 : index
    %c0_22 = arith.constant 0 : index
    %c0_23 = arith.constant 0 : index
    %45 = vector.load %arg8[%c0_21, %c0_22, %c0_23] : memref<1x128x16xf32, #tpu.memory_space<vmem>>, vector<1x128x16xf32>
    %46 = vector.shape_cast %45 : vector<1x128x16xf32> to vector<128x16xf32>
    %47 = vector.shape_cast %44 : vector<128x16xf32> to vector<1x128x16xf32>
    tpu.vector_store %arg8[%c0_21, %c0_22, %c0_23], %47 {strides = array<i32>} : memref<1x128x16xf32, #tpu.memory_space<vmem>>, vector<1x128x16xf32>,
    return
  }
  func.func @transform_0(%arg0: i32, %arg1: i32) -> (i32, i32, i32) {
    %c0_i32 = arith.constant 0 : i32
    %c0_i32_0 = arith.constant 0 : i32
    %c0_i32_1 = arith.constant 0 : i32
    return %arg0, %c0_i32, %c0_i32_0 : i32, i32, i32
  }
  func.func @transform_1(%arg0: i32, %arg1: i32) -> (i32, i32) {
    %c0_i32 = arith.constant 0 : i32
    %c0_i32_0 = arith.constant 0 : i32
    %c0_i32_1 = arith.constant 0 : i32
    return %c0_i32, %c0_i32_0 : i32, i32
  }
  func.func @transform_2(%arg0: i32, %arg1: i32) -> (i32, i32) {
    %c0_i32 = arith.constant 0 : i32
    %c0_i32_0 = arith.constant 0 : i32
    %c0_i32_1 = arith.constant 0 : i32
    return %c0_i32, %c0_i32_0 : i32, i32
  }
  func.func @transform_3(%arg0: i32, %arg1: i32) -> (i32, i32) {
    %c0_i32 = arith.constant 0 : i32
    %c0_i32_0 = arith.constant 0 : i32
    %c0_i32_1 = arith.constant 0 : i32
    return %c0_i32, %c0_i32_0 : i32, i32
  }
  func.func @transform_4(%arg0: i32, %arg1: i32) -> (i32, i32) {
    %c0_i32 = arith.constant 0 : i32
    %c0_i32_0 = arith.constant 0 : i32
    %c0_i32_1 = arith.constant 0 : i32
    return %c0_i32, %c0_i32_0 : i32, i32
  }
  func.func @transform_5(%arg0: i32, %arg1: i32) -> i32 {
    %c0_i32 = arith.constant 0 : i32
    %c0_i32_0 = arith.constant 0 : i32
    return %c0_i32 : i32
  }
  func.func @transform_6(%arg0: i32, %arg1: i32) -> (i32, i32, i32) {
    %c0_i32 = arith.constant 0 : i32
    %c0_i32_0 = arith.constant 0 : i32
    return %arg0, %arg1, %c0_i32 : i32, i32, i32
  }
  func.func @transform_7(%arg0: i32, %arg1: i32) -> (i32, i32, i32) {
    %c0_i32 = arith.constant 0 : i32
    %c0_i32_0 = arith.constant 0 : i32
    return %arg0, %arg1, %c0_i32 : i32, i32, i32
  }
}

</mosaic_0001>

<llo_original>
// kernel: tpu_custom_call.1
$region0: #{tpu_custom_call.1}
  #allocation0 [shape = 'u32[]', space=smem, size = 0x4, offset = 0x4, fixed_abs, tag = 'smem constant byte address 0x4 - core index']
  #allocation1 [shape = 'u32[144,128]{1,0:T(1,128)}', space=vmem, size = 0x12000, scoped, tag = 'internal scratch']
  #allocation2 [shape = 'bf16[128,16]{1,0:T(16,128)(2,1)}', space=vmem, size = 0x8000, scoped, tag = 'scratch operand']
  #allocation3 [shape = 'f32[1]{0:T(128)S(6)}', space=smem, size = 0x200, scoped, tag = 'scoped memory for tpu_custom_call.1']
  %s0 = inlined_call_operand.vmem [shape: f32[2,128,16], index: 0, kind: input, shape index: {}]
  %s1 = inlined_call_operand.vmem [shape: bf16[16,16], index: 1, kind: input, shape index: {}]
  %s2 = inlined_call_operand.vmem [shape: bf16[1,16], index: 2, kind: input, shape index: {}]
  %s3 = inlined_call_operand.vmem [shape: bf16[16,16], index: 3, kind: input, shape index: {}]
  %s4 = inlined_call_operand.vmem [shape: f32[1,16], index: 4, kind: input, shape index: {}]
  %s5 = inlined_call_operand.<no memory space> [shape: f32[1], index: 5, kind: input, shape index: {}]
  %s6 = inlined_call_operand.vmem [shape: f32[2,128,16], index: 6, kind: output, shape index: {0}]
  %s7 = inlined_call_operand.hbm [shape: f32[2,128,128], index: 7, kind: output, shape index: {1}]
  %8 = xla_tuple %s6, %s7
  %s9 = sld [smem:[#allocation0]]
  $region69: #{tpu_custom_call.1} parent=0
    _
  %s11 = ssub.s32 1, %s9
  %s12 = scalar_select 0, %s11, %s9
  %13 = sst [smem:[#allocation3]] %s5
  $region1: #{tpu_custom_call.1} parent=0
    #allocation4 [shape = 'u8[131072]{0}', space=vmem, size = 0x20000, scoped, tag = 'output window, operand 1']
    #allocation5 [shape = 's32[2]{0}', space=sflag, size = 0x8, scoped, tag = 'scoped memory for tpu_custom_call.1']
    %14 = vsyncpa [#allocation5], 0
    %s15 = scalar_lea.sflag [#allocation5], 1
    %16 = vsyncpa %s15, 0
    loop: start=0, step=1, limit=4
    $region2: #{tpu_custom_call.1} parent=1 // loop_pre_header
      _
    $region3: #{tpu_custom_call.1} parent=1 // loop_header
      %s18 = sphi 0, %s22
      %p19 = scmp.ge.s32.totalorder %s18, 4
      %s25 = sphi 0, %s37
      %s26 = sphi 0, %s33
      %s27 = sphi 0, %s25
      %s28 = sphi 0, %s26
      %s29 = sphi 0, %s27
      %s30 = sphi 0, %s28
      %s40 = sphi 0, %s42
      %s43 = sphi 0, %s40
      %s44 = sphi 0, %s43
      %s60 = sphi 0, %s44
      %s64 = sphi 0, %s64
      %s66 = sphi 0, %s64
      %s67 = sphi 0, %s66
      %s81 = sphi 0, %s67
      %s85 = sphi 0, %s85
      %s87 = sphi 0, %s85
      %s88 = sphi 0, %s87
      %s102 = sphi 0, %s88
      %s106 = sphi 0, %s106
      %s108 = sphi 0, %s106
      %s109 = sphi 0, %s108
      %s123 = sphi 0, %s109
      %s127 = sphi 0, %s127
      %s129 = sphi 0, %s127
      %s130 = sphi 0, %s129
      %s144 = sphi 0, %s130
      %s148 = sphi 0, %s148
      %s150 = sphi 0, %s148
      %s151 = sphi 0, %s150
      %s165 = sphi 0, %s151
      %s173 = sphi 0, %s175
      %s176 = sphi 0, %s173
      %s177 = sphi 0, %s176
      %s193 = sphi 0, %s177
      %s201 = sphi 0, %s203
      %s204 = sphi 0, %s201
      %s205 = sphi 0, %s204
      %s221 = sphi 0, %s205
    $region4: #{tpu_custom_call.1} parent=1 // loop_header_branch
      %21 = sbr.rel (%p19) target = $region8
    $region5: #{tpu_custom_call.1} parent=1 // loop_body
      %s23 = ssub.s32 %s18, 1
      %s24 = ssub.s32 %s18, 2
      %s31 = sadd.s32 1, %s26
      %p32 = scmp.ge.s32.totalorder %s31, 1
      %s33 = scalar_select %p32, 0, %s31
      %s34 = sadd.s32 1, %s25
      %s35 = scalar_select %p32, %s34, %s25
      %p36 = scmp.ge.s32.totalorder %s35, 2
      %s37 = scalar_select %p36, 0, %s35
      %s38 = ssub.s32 %s25, %s37
      %p39 = scmp.eq.s32.totalorder %s38, 0
      %s41 = sadd.s32 %s40, 1
      %s42 = scalar_select %p39, %s40, %s41
      %p45 = pneg %p39
      %p46 = scmp.eq.s32.totalorder %s18, 1
      %p47 = por %p45, %p46
      %p48 = scmp.ne.s32.totalorder %s40, %s43
      %p49 = scmp.eq.s32.totalorder %s18, 0
      %p50 = por %p48, %p49
      %p51 = scmp.ne.s32.totalorder %s40, %s43
      %p52 = scmp.eq.s32.totalorder %s23, 1
      %p53 = por %p51, %p52
      %p54 = scmp.ne.s32.totalorder %s43, %s44
      %p55 = scmp.eq.s32.totalorder %s23, 0
      %p56 = por %p54, %p55
      %p57 = scmp.ne.s32.totalorder %s43, %s44
      %p58 = scmp.eq.s32.totalorder %s24, 1
      %p59 = por %p57, %p58
      %p61 = scmp.ne.s32.totalorder %s44, %s60
      %p62 = scmp.eq.s32.totalorder %s24, 0
      %p63 = por %p61, %p62
      %s65 = sadd.s32 %s64, 1
      %p68 = scmp.eq.s32.totalorder %s18, 1
      %p69 = scmp.ne.s32.totalorder %s64, %s66
      %p70 = scmp.eq.s32.totalorder %s18, 0
      %p71 = por %p69, %p70
      %p72 = scmp.ne.s32.totalorder %s64, %s66
      %p73 = scmp.eq.s32.totalorder %s23, 1
      %p74 = por %p72, %p73
      %p75 = scmp.ne.s32.totalorder %s66, %s67
      %p76 = scmp.eq.s32.totalorder %s23, 0
      %p77 = por %p75, %p76
      %p78 = scmp.ne.s32.totalorder %s66, %s67
      %p79 = scmp.eq.s32.totalorder %s24, 1
      %p80 = por %p78, %p79
      %p82 = scmp.ne.s32.totalorder %s67, %s81
      %p83 = scmp.eq.s32.totalorder %s24, 0
      %p84 = por %p82, %p83
      %s86 = sadd.s32 %s85, 1
      %p89 = scmp.eq.s32.totalorder %s18, 1
      %p90 = scmp.ne.s32.totalorder %s85, %s87
      %p91 = scmp.eq.s32.totalorder %s18, 0
      %p92 = por %p90, %p91
      %p93 = scmp.ne.s32.totalorder %s85, %s87
      %p94 = scmp.eq.s32.totalorder %s23, 1
      %p95 = por %p93, %p94
      %p96 = scmp.ne.s32.totalorder %s87, %s88
      %p97 = scmp.eq.s32.totalorder %s23, 0
      %p98 = por %p96, %p97
      %p99 = scmp.ne.s32.totalorder %s87, %s88
      %p100 = scmp.eq.s32.totalorder %s24, 1
      %p101 = por %p99, %p100
      %p103 = scmp.ne.s32.totalorder %s88, %s102
      %p104 = scmp.eq.s32.totalorder %s24, 0
      %p105 = por %p103, %p104
      %s107 = sadd.s32 %s106, 1
      %p110 = scmp.eq.s32.totalorder %s18, 1
      %p111 = scmp.ne.s32.totalorder %s106, %s108
      %p112 = scmp.eq.s32.totalorder %s18, 0
      %p113 = por %p111, %p112
      %p114 = scmp.ne.s32.totalorder %s106, %s108
      %p115 = scmp.eq.s32.totalorder %s23, 1
      %p116 = por %p114, %p115
      %p117 = scmp.ne.s32.totalorder %s108, %s109
      %p118 = scmp.eq.s32.totalorder %s23, 0
      %p119 = por %p117, %p118
      %p120 = scmp.ne.s32.totalorder %s108, %s109
      %p121 = scmp.eq.s32.totalorder %s24, 1
      %p122 = por %p120, %p121
      %p124 = scmp.ne.s32.totalorder %s109, %s123
      %p125 = scmp.eq.s32.totalorder %s24, 0
      %p126 = por %p124, %p125
      %s128 = sadd.s32 %s127, 1
      %p131 = scmp.eq.s32.totalorder %s18, 1
      %p132 = scmp.ne.s32.totalorder %s127, %s129
      %p133 = scmp.eq.s32.totalorder %s18, 0
      %p134 = por %p132, %p133
      %p135 = scmp.ne.s32.totalorder %s127, %s129
      %p136 = scmp.eq.s32.totalorder %s23, 1
      %p137 = por %p135, %p136
      %p138 = scmp.ne.s32.totalorder %s129, %s130
      %p139 = scmp.eq.s32.totalorder %s23, 0
      %p140 = por %p138, %p139
      %p141 = scmp.ne.s32.totalorder %s129, %s130
      %p142 = scmp.eq.s32.totalorder %s24, 1
      %p143 = por %p141, %p142
      %p145 = scmp.ne.s32.totalorder %s130, %s144
      %p146 = scmp.eq.s32.totalorder %s24, 0
      %p147 = por %p145, %p146
      %s149 = sadd.s32 %s148, 1
      %p152 = scmp.eq.s32.totalorder %s18, 1
      %p153 = scmp.ne.s32.totalorder %s148, %s150
      %p154 = scmp.eq.s32.totalorder %s18, 0
      %p155 = por %p153, %p154
      %p156 = scmp.ne.s32.totalorder %s148, %s150
      %p157 = scmp.eq.s32.totalorder %s23, 1
      %p158 = por %p156, %p157
      %p159 = scmp.ne.s32.totalorder %s150, %s151
      %p160 = scmp.eq.s32.totalorder %s23, 0
      %p161 = por %p159, %p160
      %p162 = scmp.ne.s32.totalorder %s150, %s151
      %p163 = scmp.eq.s32.totalorder %s24, 1
      %p164 = por %p162, %p163
      %p166 = scmp.ne.s32.totalorder %s151, %s165
      %p167 = scmp.eq.s32.totalorder %s24, 0
      %p168 = por %p166, %p167
      %s169 = ssub.s32 %s25, %s37
      %s170 = ssub.s32 %s26, %s33
      %s171 = sor.u32 %s169, %s170
      %p172 = scmp.eq.s32.totalorder %s171, 0
      %s174 = sadd.s32 %s173, 1
      %s175 = scalar_select %p172, %s173, %s174
      %p178 = pneg %p172
      %p179 = scmp.eq.s32.totalorder %s18, 1
      %p180 = por %p178, %p179
      %p181 = scmp.ne.s32.totalorder %s173, %s176
      %p182 = scmp.eq.s32.totalorder %s18, 0
      %p183 = por %p181, %p182
      %p184 = scmp.ne.s32.totalorder %s173, %s176
      %p185 = scmp.eq.s32.totalorder %s23, 1
      %p186 = por %p184, %p185
      %p187 = scmp.ne.s32.totalorder %s176, %s177
      %p188 = scmp.eq.s32.totalorder %s23, 0
      %p189 = por %p187, %p188
      %p190 = scmp.ne.s32.totalorder %s176, %s177
      %p191 = scmp.eq.s32.totalorder %s24, 1
      %p192 = por %p190, %p191
      %p194 = scmp.ne.s32.totalorder %s177, %s193
      %p195 = scmp.eq.s32.totalorder %s24, 0
      %p196 = por %p194, %p195
      %s197 = ssub.s32 %s25, %s37
      %s198 = ssub.s32 %s26, %s33
      %s199 = sor.u32 %s197, %s198
      %p200 = scmp.eq.s32.totalorder %s199, 0
      %s202 = sadd.s32 %s201, 1
      %s203 = scalar_select %p200, %s201, %s202
      %p206 = pneg %p200
      %p207 = scmp.eq.s32.totalorder %s18, 1
      %p208 = por %p206, %p207
      %p209 = scmp.ne.s32.totalorder %s201, %s204
      %p210 = scmp.eq.s32.totalorder %s18, 0
      %p211 = por %p209, %p210
      %p212 = scmp.ne.s32.totalorder %s201, %s204
      %p213 = scmp.eq.s32.totalorder %s23, 1
      %p214 = por %p212, %p213
      %p215 = scmp.ne.s32.totalorder %s204, %s205
      %p216 = scmp.eq.s32.totalorder %s23, 0
      %p217 = por %p215, %p216
      %p218 = scmp.ne.s32.totalorder %s204, %s205
      %p219 = scmp.eq.s32.totalorder %s24, 1
      %p220 = por %p218, %p219
      %p222 = scmp.ne.s32.totalorder %s205, %s221
      %p223 = scmp.eq.s32.totalorder %s24, 0
      %p224 = por %p222, %p223
      %p225 = scmp.le.s32.totalorder 1, %s18
      %p226 = scmp.lt.s32.totalorder %s18, 3
      %p227 = pnand %p225, %p226
      %p228 = pneg %p227
      // Predicated region
      $region9: #{tpu_custom_call.1} parent=5 // pred_check
        _
      $region10: #{tpu_custom_call.1} parent=5 // pred_check_branch
        %230 = sbr.rel (%p227) target = $region12
      $region11: #{tpu_custom_call.1} parent=5 // pred_region
        %s231 = ssub.s32 %s18, 1
        // Predicated region
        $region13: #{tpu_custom_call.1} parent=11 // pred_check
          %p232 = pneg %p77
        $region14: #{tpu_custom_call.1} parent=11 // pred_check_branch
          %234 = sbr.rel (%p232) target = $region16
        $region15: #{tpu_custom_call.1} parent=11 // pred_region
          _
        $region16: #{tpu_custom_call.1} parent=11 // pred_fallthru
          _
        // Predicated region
        $region17: #{tpu_custom_call.1} parent=11 // pred_check
          %p235 = pneg %p98
        $region18: #{tpu_custom_call.1} parent=11 // pred_check_branch
          %237 = sbr.rel (%p235) target = $region20
        $region19: #{tpu_custom_call.1} parent=11 // pred_region
          _
        $region20: #{tpu_custom_call.1} parent=11 // pred_fallthru
          _
        // Predicated region
        $region21: #{tpu_custom_call.1} parent=11 // pred_check
          %p238 = pneg %p119
        $region22: #{tpu_custom_call.1} parent=11 // pred_check_branch
          %240 = sbr.rel (%p238) target = $region24
        $region23: #{tpu_custom_call.1} parent=11 // pred_region
          _
        $region24: #{tpu_custom_call.1} parent=11 // pred_fallthru
          _
        // Predicated region
        $region25: #{tpu_custom_call.1} parent=11 // pred_check
          %p241 = pneg %p140
        $region26: #{tpu_custom_call.1} parent=11 // pred_check_branch
          %243 = sbr.rel (%p241) target = $region28
        $region27: #{tpu_custom_call.1} parent=11 // pred_region
          _
        $region28: #{tpu_custom_call.1} parent=11 // pred_fallthru
          _
        // Predicated region
        $region29: #{tpu_custom_call.1} parent=11 // pred_check
          %p244 = pneg %p161
        $region30: #{tpu_custom_call.1} parent=11 // pred_check_branch
          %246 = sbr.rel (%p244) target = $region32
        $region31: #{tpu_custom_call.1} parent=11 // pred_region
          _
        $region32: #{tpu_custom_call.1} parent=11 // pred_fallthru
          _
      $region12: #{tpu_custom_call.1} parent=5 // pred_fallthru
        _
      %p247 = scmp.lt.s32.totalorder %s18, 2
      // Predicated region
      $region33: #{tpu_custom_call.1} parent=5 // pred_check
        %p248 = pneg %p247
      $region34: #{tpu_custom_call.1} parent=5 // pred_check_branch
        %250 = sbr.rel (%p248) target = $region36
      $region35: #{tpu_custom_call.1} parent=5 // pred_region
        // Predicated region
        $region37: #{tpu_custom_call.1} parent=35 // pred_check
          %p251 = pneg %p50
        $region38: #{tpu_custom_call.1} parent=35 // pred_check_branch
          %253 = sbr.rel (%p251) target = $region40
        $region39: #{tpu_custom_call.1} parent=35 // pred_region
          %p254 = scmp.lt.s32.totalorder %s25, 1
          %s255 = scalar_select %p254, %s25, 1
          %s256 = smul.addr %s255, 16
          %s257 = smul.addr %s256, 8
          %s258 = scalar_lea.vmem %s0, %s257
        $region40: #{tpu_custom_call.1} parent=35 // pred_fallthru
          _
      $region36: #{tpu_custom_call.1} parent=5 // pred_fallthru
        _
      %p259 = scmp.le.s32.totalorder 1, %s18
      %p260 = scmp.lt.s32.totalorder %s18, 3
      %p261 = pnand %p259, %p260
      %p262 = pneg %p261
      // Predicated region
      $region41: #{tpu_custom_call.1} parent=5 // pred_check
        _
      $region42: #{tpu_custom_call.1} parent=5 // pred_check_branch
        %264 = sbr.rel (%p261) target = $region44
      $region43: #{tpu_custom_call.1} parent=5 // pred_region
        %s265 = ssub.s32 %s18, 1
        %p266 = scmp.lt.s32.totalorder %s27, 1
        %s267 = scalar_select %p266, %s27, 1
        %s268 = smul.addr %s267, 16
        %s269 = smul.addr %s268, 8
        %s270 = scalar_lea.vmem %s0, %s269
        %p271 = pneg %p56
        %p272 = pneg %p53
        %p273 = pneg %p77
        %p274 = pneg %p74
        %p275 = pneg %p98
        %p276 = pneg %p95
        %p277 = pneg %p119
        %p278 = pneg %p116
        %p279 = pneg %p140
        %p280 = pneg %p137
        %p281 = pneg %p161
        %p282 = pneg %p158
        %p283 = pneg %p189
        %p284 = pneg %p186
        %s285 = smul.u32 16, %s28
        %p286 = scmp.lt.s32.totalorder %s27, 1
        %s287 = scalar_select %p286, %s27, 1
        %p288 = scmp.lt.s32.totalorder %s285, 15
        %s289 = scalar_select %p288, %s285, 15
        %s290 = smul.addr %s287, 16
        %s291 = sadd.s32 %s289, %s290
        %s292 = smul.addr %s291, 8
        %s293 = scalar_lea.vmem %s6, %s292
        %p294 = pneg %p217
        %p295 = pneg %p214
        %s296 = sand.u32 %s204, 1
        %s297 = scalar_lea.sflag [#allocation5], %s296
        %s298 = sand.u32 %s204, 1
        %s299 = smul.addr %s298, 128
        %s300 = scalar_lea.vmem [#allocation4], %s299
        %p301 = scmp.lt.s32.totalorder %s27, 1
        %s302 = scalar_select %p301, %s27, 1
        %s303 = smul.addr %s302, 16
        %s304 = smul.addr %s303, 8
        %s305 = scalar_lea.vmem %s0, %s304
        %s306 = smul.u32 16, %s28
        %p307 = scmp.lt.s32.totalorder %s27, 1
        %s308 = scalar_select %p307, %s27, 1
        %p309 = scmp.lt.s32.totalorder %s306, 15
        %s310 = scalar_select %p309, %s306, 15
        %s311 = smul.addr %s308, 16
        %s312 = sadd.s32 %s310, %s311
        %s313 = smul.addr %s312, 8
        %s314 = scalar_lea.vmem %s6, %s313
        %s315 = smul.u32 16, %s28
        %s316 = smul.u32 16, %s28
        %v318 = vld [vmem:[%s305] sm:$0xff]
        %v319 = vld [vmem:[%s305 + $0x8] sm:$0xff]
        %v320 = vld [vmem:[%s305 + $0x10] sm:$0xff]
        %v321 = vld [vmem:[%s305 + $0x18] sm:$0xff]
        %v322 = vld [vmem:[%s305 + $0x20] sm:$0xff]
        %v323 = vld [vmem:[%s305 + $0x28] sm:$0xff]
        %v324 = vld [vmem:[%s305 + $0x30] sm:$0xff]
        %v325 = vld [vmem:[%s305 + $0x38] sm:$0xff]
        %v326 = vld [vmem:[%s305 + $0x40] sm:$0xff]
        %v327 = vld [vmem:[%s305 + $0x48] sm:$0xff]
        %v328 = vld [vmem:[%s305 + $0x50] sm:$0xff]
        %v329 = vld [vmem:[%s305 + $0x58] sm:$0xff]
        %v330 = vld [vmem:[%s305 + $0x60] sm:$0xff]
        %v331 = vld [vmem:[%s305 + $0x68] sm:$0xff]
        %v332 = vld [vmem:[%s305 + $0x70] sm:$0xff]
        %v333 = vld [vmem:[%s305 + $0x78] sm:$0xff]
        %v334 = vpack.c.bf16 %v319, %v318
        %v335 = vpack.c.bf16 %v321, %v320
        %v336 = vpack.c.bf16 %v323, %v322
        %v337 = vpack.c.bf16 %v325, %v324
        %v338 = vpack.c.bf16 %v327, %v326
        %v339 = vpack.c.bf16 %v329, %v328
        %v340 = vpack.c.bf16 %v331, %v330
        %v341 = vpack.c.bf16 %v333, %v332
        %p342 = scmp.eq.s32.totalorder %s28, 0
        // Predicated region
        $region45: #{tpu_custom_call.1} parent=43 // pred_check
          %p343 = pneg %p342
        $region46: #{tpu_custom_call.1} parent=43 // pred_check_branch
          %345 = sbr.rel (%p343) target = $region48
        $region47: #{tpu_custom_call.1} parent=43 // pred_region
          %v346 = vld [vmem:[%s3] sm:$0xf]
          %v347 = vld [vmem:[%s3 + $0x4] sm:$0xf]
          %v348 = vld [vmem:[%s4] sm:$0x1]
          %v350 = vlaneseq
          %v351 = vshrl.u32 %v350, 7
          %v352 = vsub.s32 0, %v351
          %v353 = vrot.slane %v348, %v352
          %v357 = vunpack.c.l.b16 %v346
          %v358 = vunpack.c.l.b16 %v347
          %v359 = vpack.c.b16 %v358, %v357
          %vm361 = vcmask 130048
          %v363 = vsel %vm361, %v334, 0
          %v366 = vsel %vm361, %v335, 0
          %v369 = vsel %vm361, %v336, 0
          %v372 = vsel %vm361, %v337, 0
          %v375 = vsel %vm361, %v338, 0
          %v378 = vsel %vm361, %v339, 0
          %v381 = vsel %vm361, %v340, 0
          %v384 = vsel %vm361, %v341, 0
          %386 = vmatprep.subr.bf16.mxu0 0
          %387 = vmatpush1.bf16.msra.mxu0 %v359
          %388 = vmatprep.subr.bf16.mxu0 0
          %389 = vmatpush1.bf16.msra.mxu0 0
          %390 = vmatprep.subr.bf16.mxu0 0
          %391 = vmatpush1.bf16.msra.mxu0 0
          %392 = vmatprep.subr.bf16.mxu0 0
          %393 = vmatpush1.bf16.msra.mxu0 0
          %394 = vmatprep.subr.bf16.mxu0 0
          %395 = vmatpush1.bf16.msra.mxu0 0
          %396 = vmatprep.subr.bf16.mxu0 0
          %397 = vmatpush1.bf16.msra.mxu0 0
          %398 = vmatprep.subr.bf16.mxu0 0
          %399 = vmatpush1.bf16.msra.mxu0 0
          %400 = vmatprep.subr.bf16.mxu0 0
          %401 = vmatpush1.bf16.msra.mxu0 0
          %402 = vmatprep.subr.bf16.mxu0 0
          %403 = vmatpush1.bf16.msra.mxu0 0
          %404 = vmatprep.subr.bf16.mxu0 0
          %405 = vmatpush1.bf16.msra.mxu0 0
          %406 = vmatprep.subr.bf16.mxu0 0
          %407 = vmatpush1.bf16.msra.mxu0 0
          %408 = vmatprep.subr.bf16.mxu0 0
          %409 = vmatpush1.bf16.msra.mxu0 0
          %410 = vmatprep.subr.bf16.mxu0 0
          %411 = vmatpush1.bf16.msra.mxu0 0
          %412 = vmatprep.subr.bf16.mxu0 0
          %413 = vmatpush1.bf16.msra.mxu0 0
          %414 = vmatprep.subr.bf16.mxu0 0
          %415 = vmatpush1.bf16.msra.mxu0 0
          %416 = vmatprep.subr.bf16.mxu0 0
          %417 = vmatpush1.bf16.msra.mxu0 0
          %418 = vmatprep.mubr.bf16.mxu0 0
          %419 = vmatmul.mubr.bf16.gmra.mrb[0].mxu0 %v363
          %v420 = vpop.f32.mrb[0].mxu0
          %v421 = vadd.f32 %v353, %v420
          %v422 = vpop.f32.mrb[0].mxu0
          %v423 = vpop.f32.mrb[0].mxu0
          %v424 = vadd.f32 %v353, %v423
          %v425 = vpop.f32.mrb[0].mxu0
          %426 = vmatprep.mubr.bf16.mxu0 0
          %427 = vmatmul.mubr.bf16.gmra.mrb[0].mxu0 %v366
          %v428 = vpop.f32.mrb[0].mxu0
          %v429 = vadd.f32 %v353, %v428
          %v430 = vpop.f32.mrb[0].mxu0
          %v431 = vpop.f32.mrb[0].mxu0
          %v432 = vadd.f32 %v353, %v431
          %v433 = vpop.f32.mrb[0].mxu0
          %434 = vmatprep.mubr.bf16.mxu0 0
          %435 = vmatmul.mubr.bf16.gmra.mrb[0].mxu0 %v369
          %v436 = vpop.f32.mrb[0].mxu0
          %v437 = vadd.f32 %v353, %v436
          %v438 = vpop.f32.mrb[0].mxu0
          %v439 = vpop.f32.mrb[0].mxu0
          %v440 = vadd.f32 %v353, %v439
          %v441 = vpop.f32.mrb[0].mxu0
          %442 = vmatprep.mubr.bf16.mxu0 0
          %443 = vmatmul.mubr.bf16.gmra.mrb[0].mxu0 %v372
          %v444 = vpop.f32.mrb[0].mxu0
          %v445 = vadd.f32 %v353, %v444
          %v446 = vpop.f32.mrb[0].mxu0
          %v447 = vpop.f32.mrb[0].mxu0
          %v448 = vadd.f32 %v353, %v447
          %v449 = vpop.f32.mrb[0].mxu0
          %450 = vmatprep.mubr.bf16.mxu0 0
          %451 = vmatmul.mubr.bf16.gmra.mrb[0].mxu0 %v375
          %v452 = vpop.f32.mrb[0].mxu0
          %v453 = vadd.f32 %v353, %v452
          %v454 = vpop.f32.mrb[0].mxu0
          %v455 = vpop.f32.mrb[0].mxu0
          %v456 = vadd.f32 %v353, %v455
          %v457 = vpop.f32.mrb[0].mxu0
          %458 = vmatprep.mubr.bf16.mxu0 0
          %459 = vmatmul.mubr.bf16.gmra.mrb[0].mxu0 %v378
          %v460 = vpop.f32.mrb[0].mxu0
          %v461 = vadd.f32 %v353, %v460
          %v462 = vpop.f32.mrb[0].mxu0
          %v463 = vpop.f32.mrb[0].mxu0
          %v464 = vadd.f32 %v353, %v463
          %v465 = vpop.f32.mrb[0].mxu0
          %466 = vmatprep.mubr.bf16.mxu0 0
          %467 = vmatmul.mubr.bf16.gmra.mrb[0].mxu0 %v381
          %v468 = vpop.f32.mrb[0].mxu0
          %v469 = vadd.f32 %v353, %v468
          %v470 = vpop.f32.mrb[0].mxu0
          %v471 = vpop.f32.mrb[0].mxu0
          %v472 = vadd.f32 %v353, %v471
          %v473 = vpop.f32.mrb[0].mxu0
          %474 = vmatprep.mubr.bf16.mxu0 0
          %475 = vmatmul.mubr.bf16.gmra.mrb[0].mxu0 %v384
          %v476 = vpop.f32.mrb[0].mxu0
          %v477 = vadd.f32 %v353, %v476
          %v478 = vpop.f32.mrb[0].mxu0
          %v479 = vpop.f32.mrb[0].mxu0
          %v480 = vadd.f32 %v353, %v479
          %v481 = vpop.f32.mrb[0].mxu0
          %482 = vdwg.mxu0
          %v483 = vpack.c.bf16 %v424, %v421
          %v484 = vpack.c.bf16 %v432, %v429
          %v485 = vpack.c.bf16 %v440, %v437
          %v486 = vpack.c.bf16 %v448, %v445
          %v487 = vpack.c.bf16 %v456, %v453
          %v488 = vpack.c.bf16 %v464, %v461
          %v489 = vpack.c.bf16 %v472, %v469
          %v490 = vpack.c.bf16 %v480, %v477
          %491 = vst.msk [vmem:[#allocation2] sm:$0xff] %vm361, %v483
          %492 = vst.msk [vmem:[#allocation2 + $0x8] sm:$0xff] %vm361, %v484
          %493 = vst.msk [vmem:[#allocation2 + $0x10] sm:$0xff] %vm361, %v485
          %494 = vst.msk [vmem:[#allocation2 + $0x18] sm:$0xff] %vm361, %v486
          %495 = vst.msk [vmem:[#allocation2 + $0x20] sm:$0xff] %vm361, %v487
          %496 = vst.msk [vmem:[#allocation2 + $0x28] sm:$0xff] %vm361, %v488
          %497 = vst.msk [vmem:[#allocation2 + $0x30] sm:$0xff] %vm361, %v489
          %498 = vst.msk [vmem:[#allocation2 + $0x38] sm:$0xff] %vm361, %v490
        $region48: #{tpu_custom_call.1} parent=43 // pred_fallthru
          _
        %s499 = smul.u32 %s28, 128
        %s500 = scalar_lea.vmem %s305, %s499
        %v501 = vld [vmem:[%s500] sm:$0xff]
        %v502 = vld [vmem:[%s500 + $0x8] sm:$0xff]
        %v503 = vld [vmem:[%s500 + $0x10] sm:$0xff]
        %v504 = vld [vmem:[%s500 + $0x18] sm:$0xff]
        %v505 = vld [vmem:[%s500 + $0x20] sm:$0xff]
        %v506 = vld [vmem:[%s500 + $0x28] sm:$0xff]
        %v507 = vld [vmem:[%s500 + $0x30] sm:$0xff]
        %v508 = vld [vmem:[%s500 + $0x38] sm:$0xff]
        %v509 = vld [vmem:[%s500 + $0x40] sm:$0xff]
        %v510 = vld [vmem:[%s500 + $0x48] sm:$0xff]
        %v511 = vld [vmem:[%s500 + $0x50] sm:$0xff]
        %v512 = vld [vmem:[%s500 + $0x58] sm:$0xff]
        %v513 = vld [vmem:[%s500 + $0x60] sm:$0xff]
        %v514 = vld [vmem:[%s500 + $0x68] sm:$0xff]
        %v515 = vld [vmem:[%s500 + $0x70] sm:$0xff]
        %v516 = vld [vmem:[%s500 + $0x78] sm:$0xff]
        %v517 = vpack.c.bf16 %v502, %v501
        %v518 = vpack.c.bf16 %v504, %v503
        %v519 = vpack.c.bf16 %v506, %v505
        %v520 = vpack.c.bf16 %v508, %v507
        %v521 = vpack.c.bf16 %v510, %v509
        %v522 = vpack.c.bf16 %v512, %v511
        %v523 = vpack.c.bf16 %v514, %v513
        %v524 = vpack.c.bf16 %v516, %v515
        %v525 = vld [vmem:[%s1] sm:$0xf]
        %v526 = vld [vmem:[%s1 + $0x4] sm:$0xf]
        %v529 = vunpack.c.l.b16 %v525
        %v530 = vunpack.c.l.b16 %v526
        %v531 = vpack.c.b16 %v530, %v529
        %vm533 = vcmask 130048
        %v535 = vsel %vm533, %v517, 0
        %v538 = vsel %vm533, %v518, 0
        %v541 = vsel %vm533, %v519, 0
        %v544 = vsel %vm533, %v520, 0
        %v547 = vsel %vm533, %v521, 0
        %v550 = vsel %vm533, %v522, 0
        %v553 = vsel %vm533, %v523, 0
        %v556 = vsel %vm533, %v524, 0
        %558 = vmatprep.subr.bf16.mxu0 0
        %559 = vmatpush1.bf16.msra.mxu0 %v531
        %560 = vmatprep.subr.bf16.mxu0 0
        %561 = vmatpush1.bf16.msra.mxu0 0
        %562 = vmatprep.subr.bf16.mxu0 0
        %563 = vmatpush1.bf16.msra.mxu0 0
        %564 = vmatprep.subr.bf16.mxu0 0
        %565 = vmatpush1.bf16.msra.mxu0 0
        %566 = vmatprep.subr.bf16.mxu0 0
        %567 = vmatpush1.bf16.msra.mxu0 0
        %568 = vmatprep.subr.bf16.mxu0 0
        %569 = vmatpush1.bf16.msra.mxu0 0
        %570 = vmatprep.subr.bf16.mxu0 0
        %571 = vmatpush1.bf16.msra.mxu0 0
        %572 = vmatprep.subr.bf16.mxu0 0
        %573 = vmatpush1.bf16.msra.mxu0 0
        %574 = vmatprep.subr.bf16.mxu0 0
        %575 = vmatpush1.bf16.msra.mxu0 0
        %576 = vmatprep.subr.bf16.mxu0 0
        %577 = vmatpush1.bf16.msra.mxu0 0
        %578 = vmatprep.subr.bf16.mxu0 0
        %579 = vmatpush1.bf16.msra.mxu0 0
        %580 = vmatprep.subr.bf16.mxu0 0
        %581 = vmatpush1.bf16.msra.mxu0 0
        %582 = vmatprep.subr.bf16.mxu0 0
        %583 = vmatpush1.bf16.msra.mxu0 0
        %584 = vmatprep.subr.bf16.mxu0 0
        %585 = vmatpush1.bf16.msra.mxu0 0
        %586 = vmatprep.subr.bf16.mxu0 0
        %587 = vmatpush1.bf16.msra.mxu0 0
        %588 = vmatprep.subr.bf16.mxu0 0
        %589 = vmatpush1.bf16.msra.mxu0 0
        %590 = vmatprep.mubr.bf16.mxu0 0
        %591 = vmatmul.mubr.bf16.gmra.mrb[0].mxu0 %v535
        %v592 = vpop.f32.mrb[0].mxu0
        %v593 = vadd.f32 0.0, %v592
        %v594 = vpop.f32.mrb[0].mxu0
        %v595 = vpop.f32.mrb[0].mxu0
        %v596 = vadd.f32 0.0, %v595
        %v597 = vpop.f32.mrb[0].mxu0
        %598 = vmatprep.mubr.bf16.mxu0 0
        %599 = vmatmul.mubr.bf16.gmra.mrb[0].mxu0 %v538
        %v600 = vpop.f32.mrb[0].mxu0
        %v601 = vadd.f32 0.0, %v600
        %v602 = vpop.f32.mrb[0].mxu0
        %v603 = vpop.f32.mrb[0].mxu0
        %v604 = vadd.f32 0.0, %v603
        %v605 = vpop.f32.mrb[0].mxu0
        %606 = vmatprep.mubr.bf16.mxu0 0
        %607 = vmatmul.mubr.bf16.gmra.mrb[0].mxu0 %v541
        %v608 = vpop.f32.mrb[0].mxu0
        %v609 = vadd.f32 0.0, %v608
        %v610 = vpop.f32.mrb[0].mxu0
        %v611 = vpop.f32.mrb[0].mxu0
        %v612 = vadd.f32 0.0, %v611
        %v613 = vpop.f32.mrb[0].mxu0
        %614 = vmatprep.mubr.bf16.mxu0 0
        %615 = vmatmul.mubr.bf16.gmra.mrb[0].mxu0 %v544
        %v616 = vpop.f32.mrb[0].mxu0
        %v617 = vadd.f32 0.0, %v616
        %v618 = vpop.f32.mrb[0].mxu0
        %v619 = vpop.f32.mrb[0].mxu0
        %v620 = vadd.f32 0.0, %v619
        %v621 = vpop.f32.mrb[0].mxu0
        %622 = vmatprep.mubr.bf16.mxu0 0
        %623 = vmatmul.mubr.bf16.gmra.mrb[0].mxu0 %v547
        %v624 = vpop.f32.mrb[0].mxu0
        %v625 = vadd.f32 0.0, %v624
        %v626 = vpop.f32.mrb[0].mxu0
        %v627 = vpop.f32.mrb[0].mxu0
        %v628 = vadd.f32 0.0, %v627
        %v629 = vpop.f32.mrb[0].mxu0
        %630 = vmatprep.mubr.bf16.mxu0 0
        %631 = vmatmul.mubr.bf16.gmra.mrb[0].mxu0 %v550
        %v632 = vpop.f32.mrb[0].mxu0
        %v633 = vadd.f32 0.0, %v632
        %v634 = vpop.f32.mrb[0].mxu0
        %v635 = vpop.f32.mrb[0].mxu0
        %v636 = vadd.f32 0.0, %v635
        %v637 = vpop.f32.mrb[0].mxu0
        %638 = vmatprep.mubr.bf16.mxu0 0
        %639 = vmatmul.mubr.bf16.gmra.mrb[0].mxu0 %v553
        %v640 = vpop.f32.mrb[0].mxu0
        %v641 = vadd.f32 0.0, %v640
        %v642 = vpop.f32.mrb[0].mxu0
        %v643 = vpop.f32.mrb[0].mxu0
        %v644 = vadd.f32 0.0, %v643
        %v645 = vpop.f32.mrb[0].mxu0
        %646 = vmatprep.mubr.bf16.mxu0 0
        %647 = vmatmul.mubr.bf16.gmra.mrb[0].mxu0 %v556
        %v648 = vpop.f32.mrb[0].mxu0
        %v649 = vadd.f32 0.0, %v648
        %v650 = vpop.f32.mrb[0].mxu0
        %v651 = vpop.f32.mrb[0].mxu0
        %v652 = vadd.f32 0.0, %v651
        %v653 = vpop.f32.mrb[0].mxu0
        %654 = vdwg.mxu0
        %v655 = vpack.c.bf16 %v596, %v593
        %v656 = vpack.c.bf16 %v604, %v601
        %v657 = vpack.c.bf16 %v612, %v609
        %v658 = vpack.c.bf16 %v620, %v617
        %v659 = vpack.c.bf16 %v628, %v625
        %v660 = vpack.c.bf16 %v636, %v633
        %v661 = vpack.c.bf16 %v644, %v641
        %v662 = vpack.c.bf16 %v652, %v649
        %v663 = vld [vmem:[%s2] sm:$0x1]
        %v665 = vsel %vm533, %v663, 0
        %v668 = vsel %vm533, %v334, 0
        %v671 = vsel %vm533, %v335, 0
        %v674 = vsel %vm533, %v336, 0
        %v677 = vsel %vm533, %v337, 0
        %v680 = vsel %vm533, %v338, 0
        %v683 = vsel %vm533, %v339, 0
        %v686 = vsel %vm533, %v340, 0
        %v689 = vsel %vm533, %v341, 0
        %691 = vmatprep.subr.bf16.mxu0 0
        %692 = vmatpush1.bf16.xpose.msra.mxu0 %v668
        %693 = vmatprep.subr.bf16.mxu0 0
        %694 = vmatpush1.bf16.xpose.msra.mxu0 %v671
        %695 = vmatprep.subr.bf16.mxu0 0
        %696 = vmatpush1.bf16.xpose.msra.mxu0 %v674
        %697 = vmatprep.subr.bf16.mxu0 0
        %698 = vmatpush1.bf16.xpose.msra.mxu0 %v677
        %699 = vmatprep.subr.bf16.mxu0 0
        %700 = vmatpush1.bf16.xpose.msra.mxu0 %v680
        %701 = vmatprep.subr.bf16.mxu0 0
        %702 = vmatpush1.bf16.xpose.msra.mxu0 %v683
        %703 = vmatprep.subr.bf16.mxu0 0
        %704 = vmatpush1.bf16.xpose.msra.mxu0 %v686
        %705 = vmatprep.subr.bf16.mxu0 0
        %706 = vmatpush1.bf16.xpose.msra.mxu0 %v689
        %707 = vmatprep.subr.bf16.mxu0 0
        %708 = vmatpush1.bf16.xpose.msra.mxu0 0
        %709 = vmatprep.subr.bf16.mxu0 0
        %710 = vmatpush1.bf16.xpose.msra.mxu0 0
        %711 = vmatprep.subr.bf16.mxu0 0
        %712 = vmatpush1.bf16.xpose.msra.mxu0 0
        %713 = vmatprep.subr.bf16.mxu0 0
        %714 = vmatpush1.bf16.xpose.msra.mxu0 0
        %715 = vmatprep.subr.bf16.mxu0 0
        %716 = vmatpush1.bf16.xpose.msra.mxu0 0
        %717 = vmatprep.subr.bf16.mxu0 0
        %718 = vmatpush1.bf16.xpose.msra.mxu0 0
        %719 = vmatprep.subr.bf16.mxu0 0
        %720 = vmatpush1.bf16.xpose.msra.mxu0 0
        %721 = vmatprep.subr.bf16.mxu0 0
        %722 = vmatpush1.bf16.xpose.msra.mxu0 0
        %723 = vmatprep.mubr.bf16.mxu0 0
        %724 = vmatmul.mubr.bf16.gmra.mrb[0].mxu0 %v665
        %v725 = vpop.f32.mrb[0].mxu0
        %v726 = vadd.f32 0.0, %v725
        %v727 = vpop.f32.mrb[0].mxu0
        %v728 = vpop.f32.mrb[0].mxu0
        %v729 = vpop.f32.mrb[0].mxu0
        %730 = vdwg.mxu0
        %v731 = vlaneseq
        %v732 = vshrl.u32 %v731, 7
        %v733 = vsub.s32 0, %v732
        %v734 = vrot.slane %v726, %v733
        %v736 = vsel %vm533, %v655, 0
        %v739 = vsel %vm533, %v656, 0
        %v742 = vsel %vm533, %v657, 0
        %v745 = vsel %vm533, %v658, 0
        %v748 = vsel %vm533, %v659, 0
        %v751 = vsel %vm533, %v660, 0
        %v754 = vsel %vm533, %v661, 0
        %v757 = vsel %vm533, %v662, 0
        %759 = vmatprep.subr.bf16.mxu0 0
        %760 = vmatpush1.bf16.xpose.msra.mxu0 %v668
        %761 = vmatprep.subr.bf16.mxu0 0
        %762 = vmatpush1.bf16.xpose.msra.mxu0 %v671
        %763 = vmatprep.subr.bf16.mxu0 0
        %764 = vmatpush1.bf16.xpose.msra.mxu0 %v674
        %765 = vmatprep.subr.bf16.mxu0 0
        %766 = vmatpush1.bf16.xpose.msra.mxu0 %v677
        %767 = vmatprep.subr.bf16.mxu0 0
        %768 = vmatpush1.bf16.xpose.msra.mxu0 %v680
        %769 = vmatprep.subr.bf16.mxu0 0
        %770 = vmatpush1.bf16.xpose.msra.mxu0 %v683
        %771 = vmatprep.subr.bf16.mxu0 0
        %772 = vmatpush1.bf16.xpose.msra.mxu0 %v686
        %773 = vmatprep.subr.bf16.mxu0 0
        %774 = vmatpush1.bf16.xpose.msra.mxu0 %v689
        %775 = vmatprep.subr.bf16.mxu0 0
        %776 = vmatpush1.bf16.xpose.msra.mxu0 0
        %777 = vmatprep.subr.bf16.mxu0 0
        %778 = vmatpush1.bf16.xpose.msra.mxu0 0
        %779 = vmatprep.subr.bf16.mxu0 0
        %780 = vmatpush1.bf16.xpose.msra.mxu0 0
        %781 = vmatprep.subr.bf16.mxu0 0
        %782 = vmatpush1.bf16.xpose.msra.mxu0 0
        %783 = vmatprep.subr.bf16.mxu0 0
        %784 = vmatpush1.bf16.xpose.msra.mxu0 0
        %785 = vmatprep.subr.bf16.mxu0 0
        %786 = vmatpush1.bf16.xpose.msra.mxu0 0
        %787 = vmatprep.subr.bf16.mxu0 0
        %788 = vmatpush1.bf16.xpose.msra.mxu0 0
        %789 = vmatprep.subr.bf16.mxu0 0
        %790 = vmatpush1.bf16.xpose.msra.mxu0 0
        %791 = vmatprep.mubr.bf16.mxu0 0
        %792 = vmatmul.mubr.bf16.gmra.mrb[0].mxu0 %v736
        %v793 = vpop.f32.mrb[0].mxu0
        %v794 = vadd.f32 %v734, %v793
        %v795 = vpop.f32.mrb[0].mxu0
        %v796 = vpop.f32.mrb[0].mxu0
        %v797 = vadd.f32 %v734, %v796
        %v798 = vpop.f32.mrb[0].mxu0
        %799 = vmatprep.mubr.bf16.mxu0 0
        %800 = vmatmul.mubr.bf16.gmra.mrb[0].mxu0 %v739
        %v801 = vpop.f32.mrb[0].mxu0
        %v802 = vadd.f32 %v734, %v801
        %v803 = vpop.f32.mrb[0].mxu0
        %v804 = vpop.f32.mrb[0].mxu0
        %v805 = vadd.f32 %v734, %v804
        %v806 = vpop.f32.mrb[0].mxu0
        %807 = vmatprep.mubr.bf16.mxu0 0
        %808 = vmatmul.mubr.bf16.gmra.mrb[0].mxu0 %v742
        %v809 = vpop.f32.mrb[0].mxu0
        %v810 = vadd.f32 %v734, %v809
        %v811 = vpop.f32.mrb[0].mxu0
        %v812 = vpop.f32.mrb[0].mxu0
        %v813 = vadd.f32 %v734, %v812
        %v814 = vpop.f32.mrb[0].mxu0
        %815 = vmatprep.mubr.bf16.mxu0 0
        %816 = vmatmul.mubr.bf16.gmra.mrb[0].mxu0 %v745
        %v817 = vpop.f32.mrb[0].mxu0
        %v818 = vadd.f32 %v734, %v817
        %v819 = vpop.f32.mrb[0].mxu0
        %v820 = vpop.f32.mrb[0].mxu0
        %v821 = vadd.f32 %v734, %v820
        %v822 = vpop.f32.mrb[0].mxu0
        %823 = vmatprep.mubr.bf16.mxu0 0
        %824 = vmatmul.mubr.bf16.gmra.mrb[0].mxu0 %v748
        %v825 = vpop.f32.mrb[0].mxu0
        %v826 = vadd.f32 %v734, %v825
        %v827 = vpop.f32.mrb[0].mxu0
        %v828 = vpop.f32.mrb[0].mxu0
        %v829 = vadd.f32 %v734, %v828
        %v830 = vpop.f32.mrb[0].mxu0
        %831 = vmatprep.mubr.bf16.mxu0 0
        %832 = vmatmul.mubr.bf16.gmra.mrb[0].mxu0 %v751
        %v833 = vpop.f32.mrb[0].mxu0
        %v834 = vadd.f32 %v734, %v833
        %v835 = vpop.f32.mrb[0].mxu0
        %v836 = vpop.f32.mrb[0].mxu0
        %v837 = vadd.f32 %v734, %v836
        %v838 = vpop.f32.mrb[0].mxu0
        %839 = vmatprep.mubr.bf16.mxu0 0
        %840 = vmatmul.mubr.bf16.gmra.mrb[0].mxu0 %v754
        %v841 = vpop.f32.mrb[0].mxu0
        %v842 = vadd.f32 %v734, %v841
        %v843 = vpop.f32.mrb[0].mxu0
        %v844 = vpop.f32.mrb[0].mxu0
        %v845 = vadd.f32 %v734, %v844
        %v846 = vpop.f32.mrb[0].mxu0
        %847 = vmatprep.mubr.bf16.mxu0 0
        %848 = vmatmul.mubr.bf16.gmra.mrb[0].mxu0 %v757
        %v849 = vpop.f32.mrb[0].mxu0
        %v850 = vadd.f32 %v734, %v849
        %v851 = vpop.f32.mrb[0].mxu0
        %v852 = vpop.f32.mrb[0].mxu0
        %v853 = vadd.f32 %v734, %v852
        %v854 = vpop.f32.mrb[0].mxu0
        %855 = vdwg.mxu0
        %v856 = vlaneseq
        %v857 = vand.u32 %v856, 127
        %vm858 = vcmp.lt.s32.totalorder %v857, 64
        %v859 = vsel %vm858, %v794, -1e+30
        %v860 = vsel %vm858, %v797, -1e+30
        %v861 = vsel %vm858, %v802, -1e+30
        %v862 = vsel %vm858, %v805, -1e+30
        %v863 = vsel %vm858, %v810, -1e+30
        %v864 = vsel %vm858, %v813, -1e+30
        %v865 = vsel %vm858, %v818, -1e+30
        %v866 = vsel %vm858, %v821, -1e+30
        %v867 = vsel %vm858, %v826, -1e+30
        %v868 = vsel %vm858, %v829, -1e+30
        %v869 = vsel %vm858, %v834, -1e+30
        %v870 = vsel %vm858, %v837, -1e+30
        %v871 = vsel %vm858, %v842, -1e+30
        %v872 = vsel %vm858, %v845, -1e+30
        %v873 = vsel %vm858, %v850, -1e+30
        %v874 = vsel %vm858, %v853, -1e+30
        %875 = vmax.xlane.f32.xlu0 %v859
        %v876 = vpop.xlane.xlu0 %875
        %877 = vmax.xlane.f32.xlu0 %v860
        %v878 = vpop.xlane.xlu0 %877
        %879 = vmax.xlane.f32.xlu0 %v861
        %v880 = vpop.xlane.xlu0 %879
        %881 = vmax.xlane.f32.xlu0 %v862
        %v882 = vpop.xlane.xlu0 %881
        %883 = vmax.xlane.f32.xlu0 %v863
        %v884 = vpop.xlane.xlu0 %883
        %885 = vmax.xlane.f32.xlu0 %v864
        %v886 = vpop.xlane.xlu0 %885
        %887 = vmax.xlane.f32.xlu0 %v865
        %v888 = vpop.xlane.xlu0 %887
        %889 = vmax.xlane.f32.xlu0 %v866
        %v890 = vpop.xlane.xlu0 %889
        %891 = vmax.xlane.f32.xlu0 %v867
        %v892 = vpop.xlane.xlu0 %891
        %893 = vmax.xlane.f32.xlu0 %v868
        %v894 = vpop.xlane.xlu0 %893
        %895 = vmax.xlane.f32.xlu0 %v869
        %v896 = vpop.xlane.xlu0 %895
        %897 = vmax.xlane.f32.xlu0 %v870
        %v898 = vpop.xlane.xlu0 %897
        %899 = vmax.xlane.f32.xlu0 %v871
        %v900 = vpop.xlane.xlu0 %899
        %901 = vmax.xlane.f32.xlu0 %v872
        %v902 = vpop.xlane.xlu0 %901
        %903 = vmax.xlane.f32.xlu0 %v873
        %v904 = vpop.xlane.xlu0 %903
        %905 = vmax.xlane.f32.xlu0 %v874
        %v906 = vpop.xlane.xlu0 %905
        %v907 = vsub.f32 %v859, %v876
        %v908 = vsub.f32 %v860, %v878
        %v909 = vsub.f32 %v861, %v880
        %v910 = vsub.f32 %v862, %v882
        %v911 = vsub.f32 %v863, %v884
        %v912 = vsub.f32 %v864, %v886
        %v913 = vsub.f32 %v865, %v888
        %v914 = vsub.f32 %v866, %v890
        %v915 = vsub.f32 %v867, %v892
        %v916 = vsub.f32 %v868, %v894
        %v917 = vsub.f32 %v869, %v896
        %v918 = vsub.f32 %v870, %v898
        %v919 = vsub.f32 %v871, %v900
        %v920 = vsub.f32 %v872, %v902
        %v921 = vsub.f32 %v873, %v904
        %v922 = vsub.f32 %v874, %v906
        %v923 = vmul.f32 %v907, 1.442695
        %v924 = vpow.pop %v923
        %v925 = vmul.f32 %v908, 1.442695
        %v926 = vpow.pop %v925
        %v927 = vmul.f32 %v909, 1.442695
        %v928 = vpow.pop %v927
        %v929 = vmul.f32 %v910, 1.442695
        %v930 = vpow.pop %v929
        %v931 = vmul.f32 %v911, 1.442695
        %v932 = vpow.pop %v931
        %v933 = vmul.f32 %v912, 1.442695
        %v934 = vpow.pop %v933
        %v935 = vmul.f32 %v913, 1.442695
        %v936 = vpow.pop %v935
        %v937 = vmul.f32 %v914, 1.442695
        %v938 = vpow.pop %v937
        %v939 = vmul.f32 %v915, 1.442695
        %v940 = vpow.pop %v939
        %v941 = vmul.f32 %v916, 1.442695
        %v942 = vpow.pop %v941
        %v943 = vmul.f32 %v917, 1.442695
        %v944 = vpow.pop %v943
        %v945 = vmul.f32 %v918, 1.442695
        %v946 = vpow.pop %v945
        %v947 = vmul.f32 %v919, 1.442695
        %v948 = vpow.pop %v947
        %v949 = vmul.f32 %v920, 1.442695
        %v950 = vpow.pop %v949
        %v951 = vmul.f32 %v921, 1.442695
        %v952 = vpow.pop %v951
        %v953 = vmul.f32 %v922, 1.442695
        %v954 = vpow.pop %v953
        %955 = vadd.xlane.f32.xlu0 %v924
        %v956 = vpop.xlane.xlu0 %955
        %957 = vadd.xlane.f32.xlu0 %v926
        %v958 = vpop.xlane.xlu0 %957
        %959 = vadd.xlane.f32.xlu0 %v928
        %v960 = vpop.xlane.xlu0 %959
        %961 = vadd.xlane.f32.xlu0 %v930
        %v962 = vpop.xlane.xlu0 %961
        %963 = vadd.xlane.f32.xlu0 %v932
        %v964 = vpop.xlane.xlu0 %963
        %965 = vadd.xlane.f32.xlu0 %v934
        %v966 = vpop.xlane.xlu0 %965
        %967 = vadd.xlane.f32.xlu0 %v936
        %v968 = vpop.xlane.xlu0 %967
        %969 = vadd.xlane.f32.xlu0 %v938
        %v970 = vpop.xlane.xlu0 %969
        %971 = vadd.xlane.f32.xlu0 %v940
        %v972 = vpop.xlane.xlu0 %971
        %973 = vadd.xlane.f32.xlu0 %v942
        %v974 = vpop.xlane.xlu0 %973
        %975 = vadd.xlane.f32.xlu0 %v944
        %v976 = vpop.xlane.xlu0 %975
        %977 = vadd.xlane.f32.xlu0 %v946
        %v978 = vpop.xlane.xlu0 %977
        %979 = vadd.xlane.f32.xlu0 %v948
        %v980 = vpop.xlane.xlu0 %979
        %981 = vadd.xlane.f32.xlu0 %v950
        %v982 = vpop.xlane.xlu0 %981
        %983 = vadd.xlane.f32.xlu0 %v952
        %v984 = vpop.xlane.xlu0 %983
        %985 = vadd.xlane.f32.xlu0 %v954
        %v986 = vpop.xlane.xlu0 %985
        %v987 = vrcp.pop %v956
        %v988 = vrcp.pop %v958
        %v989 = vrcp.pop %v960
        %v990 = vrcp.pop %v962
        %v991 = vrcp.pop %v964
        %v992 = vrcp.pop %v966
        %v993 = vrcp.pop %v968
        %v994 = vrcp.pop %v970
        %v995 = vrcp.pop %v972
        %v996 = vrcp.pop %v974
        %v997 = vrcp.pop %v976
        %v998 = vrcp.pop %v978
        %v999 = vrcp.pop %v980
        %v1000 = vrcp.pop %v982
        %v1001 = vrcp.pop %v984
        %v1002 = vrcp.pop %v986
        %v1003 = vmul.f32 %v924, %v987
        %v1004 = vmul.f32 %v926, %v988
        %v1005 = vmul.f32 %v928, %v989
        %v1006 = vmul.f32 %v930, %v990
        %v1007 = vmul.f32 %v932, %v991
        %v1008 = vmul.f32 %v934, %v992
        %v1009 = vmul.f32 %v936, %v993
        %v1010 = vmul.f32 %v938, %v994
        %v1011 = vmul.f32 %v940, %v995
        %v1012 = vmul.f32 %v942, %v996
        %v1013 = vmul.f32 %v944, %v997
        %v1014 = vmul.f32 %v946, %v998
        %v1015 = vmul.f32 %v948, %v999
        %v1016 = vmul.f32 %v950, %v1000
        %v1017 = vmul.f32 %v952, %v1001
        %v1018 = vmul.f32 %v954, %v1002
        %1019 = vst [vmem:[%s300] sm:$0xff] %v1003
        %1020 = vst [vmem:[%s300 + $0x8] sm:$0xff] %v1004
        %1021 = vst [vmem:[%s300 + $0x10] sm:$0xff] %v1005
        %1022 = vst [vmem:[%s300 + $0x18] sm:$0xff] %v1006
        %1023 = vst [vmem:[%s300 + $0x20] sm:$0xff] %v1007
        %1024 = vst [vmem:[%s300 + $0x28] sm:$0xff] %v1008
        %1025 = vst [vmem:[%s300 + $0x30] sm:$0xff] %v1009
        %1026 = vst [vmem:[%s300 + $0x38] sm:$0xff] %v1010
        %1027 = vst [vmem:[%s300 + $0x40] sm:$0xff] %v1011
        %1028 = vst [vmem:[%s300 + $0x48] sm:$0xff] %v1012
        %1029 = vst [vmem:[%s300 + $0x50] sm:$0xff] %v1013
        %1030 = vst [vmem:[%s300 + $0x58] sm:$0xff] %v1014
        %1031 = vst [vmem:[%s300 + $0x60] sm:$0xff] %v1015
        %1032 = vst [vmem:[%s300 + $0x68] sm:$0xff] %v1016
        %1033 = vst [vmem:[%s300 + $0x70] sm:$0xff] %v1017
        %1034 = vst [vmem:[%s300 + $0x78] sm:$0xff] %v1018
        %v1035 = vpack.c.bf16 %v1004, %v1003
        %v1036 = vpack.c.bf16 %v1006, %v1005
        %v1037 = vpack.c.bf16 %v1008, %v1007
        %v1038 = vpack.c.bf16 %v1010, %v1009
        %v1039 = vpack.c.bf16 %v1012, %v1011
        %v1040 = vpack.c.bf16 %v1014, %v1013
        %v1041 = vpack.c.bf16 %v1016, %v1015
        %v1042 = vpack.c.bf16 %v1018, %v1017
        %v1043 = vld [vmem:[#allocation2] sm:$0xff]
        %v1044 = vld [vmem:[#allocation2 + $0x8] sm:$0xff]
        %v1045 = vld [vmem:[#allocation2 + $0x10] sm:$0xff]
        %v1046 = vld [vmem:[#allocation2 + $0x18] sm:$0xff]
        %v1047 = vld [vmem:[#allocation2 + $0x20] sm:$0xff]
        %v1048 = vld [vmem:[#allocation2 + $0x28] sm:$0xff]
        %v1049 = vld [vmem:[#allocation2 + $0x30] sm:$0xff]
        %v1050 = vld [vmem:[#allocation2 + $0x38] sm:$0xff]
        %1051 = vmatprep.subr.bf16.mxu0 0
        %1052 = vmatpush1.bf16.msra.mxu0 %v1043
        %1053 = vmatprep.subr.bf16.mxu0 0
        %1054 = vmatpush1.bf16.msra.mxu0 %v1044
        %1055 = vmatprep.subr.bf16.mxu0 0
        %1056 = vmatpush1.bf16.msra.mxu0 %v1045
        %1057 = vmatprep.subr.bf16.mxu0 0
        %1058 = vmatpush1.bf16.msra.mxu0 %v1046
        %1059 = vmatprep.subr.bf16.mxu0 0
        %1060 = vmatpush1.bf16.msra.mxu0 %v1047
        %1061 = vmatprep.subr.bf16.mxu0 0
        %1062 = vmatpush1.bf16.msra.mxu0 %v1048
        %1063 = vmatprep.subr.bf16.mxu0 0
        %1064 = vmatpush1.bf16.msra.mxu0 %v1049
        %1065 = vmatprep.subr.bf16.mxu0 0
        %1066 = vmatpush1.bf16.msra.mxu0 %v1050
        %1067 = vmatprep.subr.bf16.mxu0 0
        %1068 = vmatpush1.bf16.msra.mxu0 0
        %1069 = vmatprep.subr.bf16.mxu0 0
        %1070 = vmatpush1.bf16.msra.mxu0 0
        %1071 = vmatprep.subr.bf16.mxu0 0
        %1072 = vmatpush1.bf16.msra.mxu0 0
        %1073 = vmatprep.subr.bf16.mxu0 0
        %1074 = vmatpush1.bf16.msra.mxu0 0
        %1075 = vmatprep.subr.bf16.mxu0 0
        %1076 = vmatpush1.bf16.msra.mxu0 0
        %1077 = vmatprep.subr.bf16.mxu0 0
        %1078 = vmatpush1.bf16.msra.mxu0 0
        %1079 = vmatprep.subr.bf16.mxu0 0
        %1080 = vmatpush1.bf16.msra.mxu0 0
        %1081 = vmatprep.subr.bf16.mxu0 0
        %1082 = vmatpush1.bf16.msra.mxu0 0
        %1083 = vmatprep.mubr.bf16.mxu0 0
        %1084 = vmatmul.mubr.bf16.gmra.mrb[0].mxu0 %v1035
        %v1085 = vpop.f32.mrb[0].mxu0
        %v1086 = vadd.f32 0.0, %v1085
        %v1087 = vpop.f32.mrb[0].mxu0
        %v1088 = vpop.f32.mrb[0].mxu0
        %v1089 = vadd.f32 0.0, %v1088
        %v1090 = vpop.f32.mrb[0].mxu0
        %1091 = vmatprep.mubr.bf16.mxu0 0
        %1092 = vmatmul.mubr.bf16.gmra.mrb[0].mxu0 %v1036
        %v1093 = vpop.f32.mrb[0].mxu0
        %v1094 = vadd.f32 0.0, %v1093
        %v1095 = vpop.f32.mrb[0].mxu0
        %v1096 = vpop.f32.mrb[0].mxu0
        %v1097 = vadd.f32 0.0, %v1096
        %v1098 = vpop.f32.mrb[0].mxu0
        %1099 = vmatprep.mubr.bf16.mxu0 0
        %1100 = vmatmul.mubr.bf16.gmra.mrb[0].mxu0 %v1037
        %v1101 = vpop.f32.mrb[0].mxu0
        %v1102 = vadd.f32 0.0, %v1101
        %v1103 = vpop.f32.mrb[0].mxu0
        %v1104 = vpop.f32.mrb[0].mxu0
        %v1105 = vadd.f32 0.0, %v1104
        %v1106 = vpop.f32.mrb[0].mxu0
        %1107 = vmatprep.mubr.bf16.mxu0 0
        %1108 = vmatmul.mubr.bf16.gmra.mrb[0].mxu0 %v1038
        %v1109 = vpop.f32.mrb[0].mxu0
        %v1110 = vadd.f32 0.0, %v1109
        %v1111 = vpop.f32.mrb[0].mxu0
        %v1112 = vpop.f32.mrb[0].mxu0
        %v1113 = vadd.f32 0.0, %v1112
        %v1114 = vpop.f32.mrb[0].mxu0
        %1115 = vmatprep.mubr.bf16.mxu0 0
        %1116 = vmatmul.mubr.bf16.gmra.mrb[0].mxu0 %v1039
        %v1117 = vpop.f32.mrb[0].mxu0
        %v1118 = vadd.f32 0.0, %v1117
        %v1119 = vpop.f32.mrb[0].mxu0
        %v1120 = vpop.f32.mrb[0].mxu0
        %v1121 = vadd.f32 0.0, %v1120
        %v1122 = vpop.f32.mrb[0].mxu0
        %1123 = vmatprep.mubr.bf16.mxu0 0
        %1124 = vmatmul.mubr.bf16.gmra.mrb[0].mxu0 %v1040
        %v1125 = vpop.f32.mrb[0].mxu0
        %v1126 = vadd.f32 0.0, %v1125
        %v1127 = vpop.f32.mrb[0].mxu0
        %v1128 = vpop.f32.mrb[0].mxu0
        %v1129 = vadd.f32 0.0, %v1128
        %v1130 = vpop.f32.mrb[0].mxu0
        %1131 = vmatprep.mubr.bf16.mxu0 0
        %1132 = vmatmul.mubr.bf16.gmra.mrb[0].mxu0 %v1041
        %v1133 = vpop.f32.mrb[0].mxu0
        %v1134 = vadd.f32 0.0, %v1133
        %v1135 = vpop.f32.mrb[0].mxu0
        %v1136 = vpop.f32.mrb[0].mxu0
        %v1137 = vadd.f32 0.0, %v1136
        %v1138 = vpop.f32.mrb[0].mxu0
        %1139 = vmatprep.mubr.bf16.mxu0 0
        %1140 = vmatmul.mubr.bf16.gmra.mrb[0].mxu0 %v1042
        %v1141 = vpop.f32.mrb[0].mxu0
        %v1142 = vadd.f32 0.0, %v1141
        %v1143 = vpop.f32.mrb[0].mxu0
        %v1144 = vpop.f32.mrb[0].mxu0
        %v1145 = vadd.f32 0.0, %v1144
        %v1146 = vpop.f32.mrb[0].mxu0
        %1147 = vdwg.mxu0
        %s1148 = sld [smem:[#allocation3]]
        %v1149 = vstv %s1148
        %v1150 = vmul.f32 %v1149, %v1086
        %v1151 = vmul.f32 %v1149, %v1089
        %v1152 = vmul.f32 %v1149, %v1094
        %v1153 = vmul.f32 %v1149, %v1097
        %v1154 = vmul.f32 %v1149, %v1102
        %v1155 = vmul.f32 %v1149, %v1105
        %v1156 = vmul.f32 %v1149, %v1110
        %v1157 = vmul.f32 %v1149, %v1113
        %v1158 = vmul.f32 %v1149, %v1118
        %v1159 = vmul.f32 %v1149, %v1121
        %v1160 = vmul.f32 %v1149, %v1126
        %v1161 = vmul.f32 %v1149, %v1129
        %v1162 = vmul.f32 %v1149, %v1134
        %v1163 = vmul.f32 %v1149, %v1137
        %v1164 = vmul.f32 %v1149, %v1142
        %v1165 = vmul.f32 %v1149, %v1145
        %v1166 = vadd.f32 %v1150, %v501
        %v1167 = vadd.f32 %v1151, %v502
        %v1168 = vadd.f32 %v1152, %v503
        %v1169 = vadd.f32 %v1153, %v504
        %v1170 = vadd.f32 %v1154, %v505
        %v1171 = vadd.f32 %v1155, %v506
        %v1172 = vadd.f32 %v1156, %v507
        %v1173 = vadd.f32 %v1157, %v508
        %v1174 = vadd.f32 %v1158, %v509
        %v1175 = vadd.f32 %v1159, %v510
        %v1176 = vadd.f32 %v1160, %v511
        %v1177 = vadd.f32 %v1161, %v512
        %v1178 = vadd.f32 %v1162, %v513
        %v1179 = vadd.f32 %v1163, %v514
        %v1180 = vadd.f32 %v1164, %v515
        %v1181 = vadd.f32 %v1165, %v516
        %1182 = vst.msk [vmem:[%s314] sm:$0xff] %vm533, %v1166
        %1183 = vst.msk [vmem:[%s314 + $0x8] sm:$0xff] %vm533, %v1167
        %1184 = vst.msk [vmem:[%s314 + $0x10] sm:$0xff] %vm533, %v1168
        %1185 = vst.msk [vmem:[%s314 + $0x18] sm:$0xff] %vm533, %v1169
        %1186 = vst.msk [vmem:[%s314 + $0x20] sm:$0xff] %vm533, %v1170
        %1187 = vst.msk [vmem:[%s314 + $0x28] sm:$0xff] %vm533, %v1171
        %1188 = vst.msk [vmem:[%s314 + $0x30] sm:$0xff] %vm533, %v1172
        %1189 = vst.msk [vmem:[%s314 + $0x38] sm:$0xff] %vm533, %v1173
        %1190 = vst.msk [vmem:[%s314 + $0x40] sm:$0xff] %vm533, %v1174
        %1191 = vst.msk [vmem:[%s314 + $0x48] sm:$0xff] %vm533, %v1175
        %1192 = vst.msk [vmem:[%s314 + $0x50] sm:$0xff] %vm533, %v1176
        %1193 = vst.msk [vmem:[%s314 + $0x58] sm:$0xff] %vm533, %v1177
        %1194 = vst.msk [vmem:[%s314 + $0x60] sm:$0xff] %vm533, %v1178
        %1195 = vst.msk [vmem:[%s314 + $0x68] sm:$0xff] %vm533, %v1179
        %1196 = vst.msk [vmem:[%s314 + $0x70] sm:$0xff] %vm533, %v1180
        %1197 = vst.msk [vmem:[%s314 + $0x78] sm:$0xff] %vm533, %v1181
        %s1198 = smul.u32 16, %s28
        %p1199 = scmp.lt.s32.totalorder %s27, 1
        %s1200 = scalar_select %p1199, %s27, 1
        %p1201 = scmp.lt.s32.totalorder %s1198, 15
        %s1202 = scalar_select %p1201, %s1198, 15
        %s1203 = smul.addr %s1200, 16
        %s1204 = sadd.s32 %s1202, %s1203
        %s1205 = smul.addr %s1204, 8
        %s1206 = scalar_lea.vmem %s6, %s1205
        %s1207 = sand.u32 %s204, 1
        %s1208 = scalar_lea.sflag [#allocation5], %s1207
        %s1209 = sand.u32 %s204, 1
        %s1210 = smul.addr %s1209, 128
        %s1211 = scalar_lea.vmem [#allocation4], %s1210
        // Predicated region
        $region49: #{tpu_custom_call.1} parent=43 // pred_check
          %p1212 = pneg %p186
        $region50: #{tpu_custom_call.1} parent=43 // pred_check_branch
          %1214 = sbr.rel (%p1212) target = $region52
        $region51: #{tpu_custom_call.1} parent=43 // pred_region
          %s1215 = smul.u32 16, %s28
        $region52: #{tpu_custom_call.1} parent=43 // pred_fallthru
          _
        // Predicated region
        $region53: #{tpu_custom_call.1} parent=43 // pred_check
          %p1216 = pneg %p214
        $region54: #{tpu_custom_call.1} parent=43 // pred_check_branch
          %1218 = sbr.rel (%p1216) target = $region56
        $region55: #{tpu_custom_call.1} parent=43 // pred_region
          %s1219 = smul.u32 16, %s28
          %s1221 = ssub.s32 2048, 2048
          %1222 = vsyncadd %s1208, %s1221
          %s1223 = smul.addr %s27, 16
          %s1224 = sadd.s32 %s1219, %s1223
          %s1225 = smul.addr %s1224, 128
          %s1226 = scalar_lea.hbm %s7, %s1225
          %s1227 = sshll.u32 %s1211, 4
          %s1228 = int_to_ptr.vmem [resolvable:$true] %s1227
          %1233 = dma.vmem_to_hbm [thread:$0]  %s1228, 2048, %s1226, %s1208, 128, 128, 8
        $region56: #{tpu_custom_call.1} parent=43 // pred_fallthru
          _
      $region44: #{tpu_custom_call.1} parent=5 // pred_fallthru
        _
      %p1234 = scmp.le.s32.totalorder 2, %s18
      // Predicated region
      $region57: #{tpu_custom_call.1} parent=5 // pred_check
        %p1235 = pneg %p1234
      $region58: #{tpu_custom_call.1} parent=5 // pred_check_branch
        %1237 = sbr.rel (%p1235) target = $region60
      $region59: #{tpu_custom_call.1} parent=5 // pred_region
        %s1238 = ssub.s32 %s18, 2
        // Predicated region
        $region61: #{tpu_custom_call.1} parent=59 // pred_check
          %p1239 = pneg %p192
        $region62: #{tpu_custom_call.1} parent=59 // pred_check_branch
          %1241 = sbr.rel (%p1239) target = $region64
        $region63: #{tpu_custom_call.1} parent=59 // pred_region
          %s1242 = smul.u32 16, %s30
          %p1243 = scmp.lt.s32.totalorder %s29, 1
          %s1244 = scalar_select %p1243, %s29, 1
          %p1245 = scmp.lt.s32.totalorder %s1242, 15
          %s1246 = scalar_select %p1245, %s1242, 15
          %s1247 = smul.addr %s1244, 16
          %s1248 = sadd.s32 %s1246, %s1247
          %s1249 = smul.addr %s1248, 8
          %s1250 = scalar_lea.vmem %s6, %s1249
        $region64: #{tpu_custom_call.1} parent=59 // pred_fallthru
          _
        // Predicated region
        $region65: #{tpu_custom_call.1} parent=59 // pred_check
          %p1251 = pneg %p220
        $region66: #{tpu_custom_call.1} parent=59 // pred_check_branch
          %1253 = sbr.rel (%p1251) target = $region68
        $region67: #{tpu_custom_call.1} parent=59 // pred_region
          %s1254 = sand.u32 %s205, 1
          %s1255 = scalar_lea.sflag [#allocation5], %s1254
          %s1256 = sand.u32 %s205, 1
          %s1257 = smul.addr %s1256, 128
          %s1258 = scalar_lea.vmem [#allocation4], %s1257
          %1259 = dma.done %s1255, 2048
        $region68: #{tpu_custom_call.1} parent=59 // pred_fallthru
          _
      $region60: #{tpu_custom_call.1} parent=5 // pred_fallthru
        _
    $region6: #{tpu_custom_call.1} parent=1 // loop_footer
      %s22 = sadd.s32 1, %s18
    $region7: #{tpu_custom_call.1} parent=1 // loop_footer_branch
      %17 = sbr.rel target = $region3
    $region8: #{tpu_custom_call.1} parent=1 // loop_exit
      _
    %1260 = vsyncpa [#allocation5], 1
    %s1261 = scalar_lea.sflag [#allocation5], 1
    %1262 = vsyncpa %s1261, 1

</llo_original>
